<compile_context>
chip_gen: v7x
topology: tpu7x:2x2x1
jax: 0.10.0
libtpu: 0.0.40
codegen_flags: <defaults>
</compile_context>

<pallas_src>
import functools

import jax
import jax.numpy as jnp
from jax.experimental import pallas as pl
from jax.experimental.pallas import tpu as pltpu


# ---------------------------------------------------------------------------
# pltpu.roll direction probe (robust to either rotate convention), cached per
# process via lru_cache (no mutable global).  We need T[:, q] = act[:, q + s];
# if pltpu.roll matches jnp.roll (out[q] = in[q - shift]) the shift is -s.
# ---------------------------------------------------------------------------
@functools.lru_cache(maxsize=None)
def _get_roll_sign():
    w = 256

    def probe(x_ref, o_ref):
        o_ref[...] = pltpu.roll(x_ref[...], 1, 1)

    x = jnp.tile(jnp.arange(w, dtype=jnp.float32)[None, :], (8, 1))
    out = pl.pallas_call(
        probe, out_shape=jax.ShapeDtypeStruct((8, w), jnp.float32))(x)
    return -1 if bool(out[0, 0] == w - 1) else 1


# ---------------------------------------------------------------------------
# Fused kernel: 4x (conv3x3 + folded BN + ReLU) with both branches stacked on
# channels -> 1x1 conv -> vectorized soft-argmax.  Single invocation (no grid).
# ---------------------------------------------------------------------------
def _corner_kernel(x_ref, meta_ref,
                   w1_ref, b1_ref, w2_ref, b2_ref, w3_ref, b3_ref,
                   w4_ref, b4_ref, w5_ref,
                   o_ref, slab_ref,
                   *, roll_sign, n_batch, wp, img_sz):
    tot = x_ref.shape[1]

    meta = meta_ref[...]                      # (4, tot)
    interior = meta[0:1, :]                   # 1 inside the image, 0 ring/tail
    bid = meta[1:2, :]                        # batch id per lane, -1 off-image
    cx = meta[2:3, :]                         # coord_x = column * stride
    cy = meta[3:4, :]                         # coord_y = row * stride

    def rollq(v, s):
        return pltpu.roll(v, (roll_sign * s) % tot, 1)

    def conv_bn_relu(act, w_ref, b_ref):
        cin = act.shape[0]
        base = 3 * cin
        # middle (dx=1) block: dy = 0,1,2 <-> lane shifts -wp, 0, +wp
        slab_ref[pl.ds(base, cin), :] = rollq(act, -wp)
        slab_ref[pl.ds(base + cin, cin), :] = act
        slab_ref[pl.ds(base + 2 * cin, cin), :] = rollq(act, wp)
        mid = slab_ref[pl.ds(base, 3 * cin), :]
        # outer dx = 0 / 2 blocks: +-1 lane rolls of the whole row-slab
        slab_ref[pl.ds(0, 3 * cin), :] = rollq(mid, -1)
        slab_ref[pl.ds(6 * cin, 3 * cin), :] = rollq(mid, 1)
        slab = slab_ref[pl.ds(0, 9 * cin), :]                    # (9*Cin, tot)
        y = jnp.dot(w_ref[...], slab, preferred_element_type=jnp.float32)
        # folded bias + ReLU, then re-zero the padding ring / tail lanes
        return jnp.maximum(y + b_ref[...], 0.0) * interior

    act = x_ref[...]                                             # (Cin0, tot)
    act = conv_bn_relu(act, w1_ref, b1_ref)                      # (2*C,  tot)
    act = conv_bn_relu(act, w2_ref, b2_ref)                      # (2*C/2,tot)
    act = conv_bn_relu(act, w3_ref, b3_ref)                      # (2*C/4,tot)
    act = conv_bn_relu(act, w4_ref, b4_ref)                      # (2*C/8,tot)

    # final 1x1 conv on the VPU; bias dropped (cancels in the softmax)
    prod = act * w5_ref[...]                                     # (2*C/8, tot)
    half = prod.shape[0] // 2
    score_tl = jnp.sum(prod[:half], axis=0, keepdims=True)       # (1, tot)
    score_br = jnp.sum(prod[half:], axis=0, keepdims=True)       # (1, tot)

    # vectorized soft-argmax over (branch, batch): one masked (2N, tot) pass
    sub = jax.lax.broadcasted_iota(jnp.int32, (n_batch, tot), 0)
    bm = (bid == sub.astype(jnp.float32)).astype(jnp.float32)    # (N, tot)
    bm2 = jnp.concatenate([bm, bm], axis=0)                      # (2N, tot)
    sc2 = jnp.concatenate([jnp.broadcast_to(score_tl, (n_batch, tot)),
                           jnp.broadcast_to(score_br, (n_batch, tot))],
                          axis=0)                                # (2N, tot)
    sm = jnp.where(bm2 > 0.0, sc2, jnp.float32(-1e30))
    mx = jnp.max(sm, axis=1, keepdims=True)                      # (2N, 1)
    e = jnp.exp(sm - mx) * bm2
    denom = jnp.sum(e, axis=1, keepdims=True)
    inv = pl.reciprocal(denom * img_sz, approx=False)
    ex = jnp.sum(e * cx, axis=1, keepdims=True) * inv            # (2N, 1)
    ey = jnp.sum(e * cy, axis=1, keepdims=True) * inv

    lane = jax.lax.broadcasted_iota(jnp.int32, (2 * n_batch, 128), 1)
    o_ref[...] = jnp.where(lane == 0, ex, 0.0) + jnp.where(lane == 1, ey, 0.0)


# ---------------------------------------------------------------------------
# Parameter construction: deterministic synthetic weights/BN stats, folded to
# MXU-ready branch-fused weights (dense stack for layer 1, block-diagonal for
# layers 2-4, stacked 1x1 vector) + raw per-branch params for the reference.
# ---------------------------------------------------------------------------
def make_corner_params(key, inplanes=8, channel=32, eps=1e-5):
    chans = [inplanes, channel, channel // 2, channel // 4, channel // 8]
    k_tl, k_br = jax.random.split(key)

    def one_branch(bkey):
        keys = jax.random.split(bkey, 5)
        folded, raw = [], []
        for i in range(4):
            k = jax.random.split(keys[i], 6)
            cin, cout = chans[i], chans[i + 1]
            w = jax.random.normal(k[0], (cout, cin, 3, 3), jnp.float32) * 0.1
            b = jax.random.normal(k[1], (cout,), jnp.float32) * 0.1
            gamma = 0.5 + jax.random.uniform(k[2], (cout,), jnp.float32)
            beta = jax.random.normal(k[3], (cout,), jnp.float32) * 0.1
            mean = jax.random.normal(k[4], (cout,), jnp.float32) * 0.1
            var = 0.5 + jax.random.uniform(k[5], (cout,), jnp.float32)
            scale = gamma / jnp.sqrt(var + eps)
            # (Cout, Cin, kh, kw) -> (Cout, kw, kh, Cin): tap order matches the
            # dx-outer / dy-inner im2col built by the kernel's 4-roll factoring.
            w2 = (jnp.transpose(w, (0, 3, 2, 1)).reshape(cout, 9, cin)
                  * scale[:, None, None])
            bias = (beta + scale * (b - mean))[:, None]
            folded.append((w2, bias))
            raw.append((w, b, gamma, beta, mean, var))
        k = jax.random.split(keys[4], 2)
        cin = chans[4]
        w5 = jax.random.normal(k[0], (1, cin, 1, 1), jnp.float32) * 0.1
        b5 = jax.random.normal(k[1], (1,), jnp.float32) * 0.1
        folded.append((w5.reshape(cin), b5))
        raw.append((w5, b5))
        return folded, raw

    folded_tl, raw_tl = one_branch(k_tl)
    folded_br, raw_br = one_branch(k_br)

    fused = []
    # layer 1: shared input -> dense row stack (2*Cout, 9*Cin0)
    (w_tl, b_tl), (w_br, b_br) = folded_tl[0], folded_br[0]
    cout = chans[1]
    fused.append(jnp.concatenate([w_tl, w_br], axis=0)
                 .reshape(2 * cout, 9 * chans[0]))
    fused.append(jnp.concatenate([b_tl, b_br], axis=0))
    # layers 2..4: stacked channels -> block-diagonal weights
    for i in range(1, 4):
        cin, cout = chans[i], chans[i + 1]
        (w_tl, b_tl), (w_br, b_br) = folded_tl[i], folded_br[i]
        wfull = jnp.zeros((2 * cout, 9, 2 * cin), jnp.float32)
        wfull = wfull.at[:cout, :, :cin].set(w_tl)
        wfull = wfull.at[cout:, :, cin:].set(w_br)
        fused.append(wfull.reshape(2 * cout, 9 * 2 * cin))
        fused.append(jnp.concatenate([b_tl, b_br], axis=0))
    # final 1x1: stacked weight vector; bias dropped (cancels in the softmax)
    w5_tl, _ = folded_tl[4]
    w5_br, _ = folded_br[4]
    fused.append(jnp.concatenate([w5_tl, w5_br], axis=0)[:, None])   # (8, 1)
    return fused, (raw_tl, raw_br)


# ---------------------------------------------------------------------------
# Forward wrapper (NCHW in, (N, 4) normalized corner coordinates out).
# ---------------------------------------------------------------------------
def corner_predictor_forward(x_nchw, fused_params, *, feat_sz=16, stride=16):
    n, c0, h, w = x_nchw.shape
    assert h == feat_sz and w == feat_sz
    wp = feat_sz + 2
    blk = ((wp * wp + 127) // 128) * 128          # lane-dense per-image block
    tot = n * blk
    img_sz = feat_sz * stride

    # input -> padded-flat layout (zero ring + tail), batch folded onto lanes
    xpad = jnp.pad(x_nchw, ((0, 0), (0, 0), (1, 1), (1, 1)))      # (N,C,18,18)
    xpad = xpad.reshape(n, c0, wp * wp)
    xpad = jnp.pad(xpad, ((0, 0), (0, 0), (0, blk - wp * wp)))    # (N,C,384)
    x_flat = jnp.transpose(xpad, (1, 0, 2)).reshape(c0, tot)      # (C, N*384)

    # (4, tot) metadata slab: interior mask, batch id (-1 off-image), coords
    p = jnp.arange(blk)
    xi = p % wp
    yi = p // wp
    inb = ((xi >= 1) & (xi <= feat_sz) & (yi >= 1) & (yi <= feat_sz)
           & (p < wp * wp)).astype(jnp.float32)
    interior = jnp.tile(inb, (n,))
    bid = jnp.repeat(jnp.arange(n, dtype=jnp.float32), blk)
    bid = jnp.where(interior > 0, bid, -1.0)
    cx = jnp.tile(((xi - 1) * stride).astype(jnp.float32), (n,))
    cy = jnp.tile(((yi - 1) * stride).astype(jnp.float32), (n,))
    meta = jnp.stack([interior, bid, cx, cy], axis=0)             # (4, N*384)

    slab_rows = max(fused_params[2 * i].shape[1] for i in range(4))

    kernel = functools.partial(
        _corner_kernel, roll_sign=_get_roll_sign(), n_batch=n, wp=wp,
        img_sz=float(img_sz))

    out = pl.pallas_call(
        kernel,
        out_shape=jax.ShapeDtypeStruct((2 * n, 128), jnp.float32),
        scratch_shapes=[pltpu.VMEM((slab_rows, tot), jnp.float32)],
    )(x_flat, meta, *fused_params)

    # rows 0..N-1 = tl, rows N..2N-1 = br; lanes 0/1 = exp_x, exp_y / img_sz
    return jnp.stack([out[0:n, 0], out[0:n, 1], out[n:2 * n, 0],
                      out[n:2 * n, 1]], axis=1)


# ---------------------------------------------------------------------------
# Pure-JAX reference (unfolded BN) for a numerical sanity check.
# ---------------------------------------------------------------------------
def corner_predictor_reference(x_nchw, raw_params, *, feat_sz=16, stride=16,
                               eps=1e-5):
    raw_tl, raw_br = raw_params

    def branch(x, raw):
        h = jnp.transpose(x, (0, 2, 3, 1))                        # NHWC
        for (w, b, gamma, beta, mean, var) in raw[:4]:
            y = jax.lax.conv_general_dilated(
                h, jnp.transpose(w, (2, 3, 1, 0)), (1, 1), [(1, 1), (1, 1)],
                dimension_numbers=("NHWC", "HWIO", "NHWC")) + b
            y = (y - mean) / jnp.sqrt(var + eps) * gamma + beta
            h = jnp.maximum(y, 0.0)
        w5, b5 = raw[4]
        y = jax.lax.conv_general_dilated(
            h, jnp.transpose(w5, (2, 3, 1, 0)), (1, 1), [(0, 0), (0, 0)],
            dimension_numbers=("NHWC", "HWIO", "NHWC")) + b5
        score = y[..., 0].reshape(x.shape[0], feat_sz * feat_sz)
        prob = jax.nn.softmax(score, axis=1)
        idx = jnp.arange(feat_sz, dtype=jnp.float32) * stride
        coord_x = jnp.tile(idx, (feat_sz,))
        coord_y = jnp.repeat(idx, feat_sz)
        return jnp.sum(prob * coord_x, axis=1), jnp.sum(prob * coord_y, axis=1)

    ex_tl, ey_tl = branch(x_nchw, raw_tl)
    ex_br, ey_br = branch(x_nchw, raw_br)
    return jnp.stack([ex_tl, ey_tl, ex_br, ey_br], axis=1) / (feat_sz * stride)


if __name__ == "__main__":
    # Small shapes consistent with the module: inplanes=8, channel=32, feat_sz=16
    batch, inplanes, channel, feat_sz, stride = 2, 8, 32, 16, 16

    root = jax.random.PRNGKey(0)
    k_params, k_x = jax.random.split(root)
    fused_params, raw_params = make_corner_params(
        k_params, inplanes=inplanes, channel=channel)
    x = jax.random.normal(k_x, (batch, inplanes, feat_sz, feat_sz), jnp.float32)

    out = corner_predictor_forward(x, fused_params, feat_sz=feat_sz,
                                   stride=stride)
    out = jax.block_until_ready(out)
    assert out.shape == (batch, 4), out.shape

    ref = jax.block_until_ready(
        corner_predictor_reference(x, raw_params, feat_sz=feat_sz,
                                   stride=stride))
    if not jnp.allclose(out, ref, rtol=1e-3, atol=1e-3):
        raise AssertionError(
            "Pallas corner predictor does not match reference; "
            f"max abs err = {float(jnp.max(jnp.abs(out - ref)))}")

    print("KERNEL_OK")
</pallas_src>

<mosaic_0001>
module attributes {stable_mosaic.version = 11 : i64} {
  func.func @probe(%arg0: memref<8x256xf32, #tpu.memory_space<vmem>>, %arg1: memref<8x256xf32, #tpu.memory_space<vmem>>) attributes {dimension_semantics = [], scalar_prefetch = 0 : i64, scratch_operands = 0 : i64, tpu.core_type = #tpu.core_type<tc>} {
    %c0 = arith.constant 0 : index
    %c0_0 = arith.constant 0 : index
    %0 = vector.load %arg0[%c0, %c0_0] : memref<8x256xf32, #tpu.memory_space<vmem>>, vector<8x256xf32>
    %c1_i32 = arith.constant 1 : i32
    %1 = tpu.dynamic_rotate %0 by %c1_i32 dim 1 : vector<8x256xf32>, i32 -> vector<8x256xf32>
    %c0_1 = arith.constant 0 : index
    %c0_2 = arith.constant 0 : index
    %2 = vector.load %arg1[%c0_1, %c0_2] : memref<8x256xf32, #tpu.memory_space<vmem>>, vector<8x256xf32>
    tpu.vector_store %arg1[%c0_1, %c0_2], %1 {strides = array<i32>} : memref<8x256xf32, #tpu.memory_space<vmem>>, vector<8x256xf32>,
    return
  }
}

</mosaic_0001>

<llo_original>
// kernel: tpu_custom_call.1
$region0: #{tpu_custom_call.1}
  #allocation0 [shape = 'u32[]', space=smem, size = 0x4, offset = 0x4, fixed_abs, tag = 'smem constant byte address 0x4 - core index']
  #allocation1 [shape = 'u32[144,128]{1,0:T(1,128)}', space=vmem, size = 0x12000, scoped, tag = 'internal scratch']
  %s0 = inlined_call_operand.hbm [shape: f32[8,256], index: 0, kind: input, shape index: {}]
  %s1 = inlined_call_operand.hbm [shape: f32[8,256], index: 1, kind: output, shape index: {}]
  %s2 = sld [smem:[#allocation0]]
  $region18: #{tpu_custom_call.1} parent=0
    _
  %s4 = ssub.s32 1, %s2
  %s5 = scalar_select 0, %s4, %s2
  $region1: #{tpu_custom_call.1} parent=0
    #allocation2 [shape = 'u8[8192]{0}', space=vmem, size = 0x2000, scoped, tag = 'input window, operand 0, single buffered']
    #allocation3 [shape = 's32[1]{0}', space=sflag, size = 0x4, scoped, tag = 'scoped memory for tpu_custom_call.1']
    #allocation4 [shape = 's32[1]{0}', space=sflag, size = 0x4, scoped, tag = 'scoped memory for tpu_custom_call.1']
    #allocation5 [shape = 'u8[8192]{0}', space=vmem, size = 0x2000, scoped, tag = 'output window, operand 0, single buffered']
    %6 = vsyncpa [#allocation3], 0
    %7 = vsyncpa [#allocation4], 0
    // Predicated region
    $region2: #{tpu_custom_call.1} parent=1 // pred_check
      _
    $region3: #{tpu_custom_call.1} parent=1 // pred_check_branch
      %9 = sbr.rel (0) target = $region5
    $region4: #{tpu_custom_call.1} parent=1 // pred_region
      %s11 = ssub.s32 256, 256
      %12 = vsyncadd [#allocation3], %s11
      %s14 = sshll.u32 [#allocation2], 4
      %s15 = int_to_ptr.vmem [resolvable:$true] %s14
      %17 = dma.hbm_to_vmem [thread:$0]  %s0, 256, %s15, [#allocation3]
    $region5: #{tpu_custom_call.1} parent=1 // pred_fallthru
      _
    // Predicated region
    $region6: #{tpu_custom_call.1} parent=1 // pred_check
      _
    $region7: #{tpu_custom_call.1} parent=1 // pred_check_branch
      %19 = sbr.rel (0) target = $region9
    $region8: #{tpu_custom_call.1} parent=1 // pred_region
      %20 = dma.done [#allocation3], 256
    $region9: #{tpu_custom_call.1} parent=1 // pred_fallthru
      _
    %v21 = vld [vmem:[#allocation2] sm:$0xff]
    %v22 = vld [vmem:[#allocation2 + $0x8] sm:$0xff]
    %23 = vrot.lane.b32.xlu0 %v21, 1
    %v24 = vpop.permute.xlu0 %23
    %25 = vrot.lane.b32.xlu0 %v22, 1
    %v26 = vpop.permute.xlu0 %25
    %v27 = vlaneseq
    %v28 = vand.u32 %v27, 127
    %vm29 = vcmp.lt.s32.totalorder %v28, 1
    %v30 = vsel %vm29, %v24, %v26
    %v31 = vsel %vm29, %v26, %v24
    %32 = vst [vmem:[#allocation5] sm:$0xff] %v31
    %33 = vst [vmem:[#allocation5 + $0x8] sm:$0xff] %v30
    // Predicated region
    $region10: #{tpu_custom_call.1} parent=1 // pred_check
      _
    $region11: #{tpu_custom_call.1} parent=1 // pred_check_branch
      %35 = sbr.rel (0) target = $region13
    $region12: #{tpu_custom_call.1} parent=1 // pred_region
      %s37 = ssub.s32 256, 256
      %38 = vsyncadd [#allocation4], %s37
      %s40 = sshll.u32 [#allocation5], 4
      %s41 = int_to_ptr.vmem [resolvable:$true] %s40
      %43 = dma.vmem_to_hbm [thread:$0]  %s41, 256, %s1, [#allocation4]
    $region13: #{tpu_custom_call.1} parent=1 // pred_fallthru
      _
    // Predicated region
    $region14: #{tpu_custom_call.1} parent=1 // pred_check
      _
    $region15: #{tpu_custom_call.1} parent=1 // pred_check_branch
      %45 = sbr.rel (0) target = $region17
    $region16: #{tpu_custom_call.1} parent=1 // pred_region
      %46 = dma.done [#allocation4], 256
    $region17: #{tpu_custom_call.1} parent=1 // pred_fallthru
      _
    %47 = vsyncpa [#allocation3], 1
    %48 = vsyncpa [#allocation4], 1

</llo_original>
